<compile_context>
chip_gen: v7x
topology: tpu7x:2x2x1
jax: 0.10.0
libtpu: 0.0.40
codegen_flags: <defaults>
</compile_context>

<pallas_src>
import functools

import jax
import jax.numpy as jnp
from jax.experimental import pallas as pl
from jax.experimental.pallas import tpu as pltpu

IN_FEATURES = 784
HIDDEN = 64
NUM_CLASSES = 10
CLS_PAD = 128         # lane-dense output width (10 -> 128)


def _round_up(n, m):
    return (n + m - 1) // m * m


def mlp_kernel(x_ref, w1_ref, b1_ref, w2_ref, b2_ref, w4_ref, b4_ref, o_ref,
               *, num_classes):
    # fc1 + relu : cast x to bf16 in-kernel (no host-side re-materialization),
    # bf16 x bf16 -> f32 accumulate on the MXU.
    x = x_ref[...].astype(jnp.bfloat16)
    h = jnp.dot(x, w1_ref[...], preferred_element_type=jnp.float32)
    h = jnp.maximum(h + b1_ref[...], 0.0)

    # fc2 + relu, applied twice (fc3 exists in __init__ but is unused in forward).
    # w2 is VMEM-resident; re-reading it twice costs only vld slots.
    h = jnp.dot(h.astype(jnp.bfloat16), w2_ref[...],
                preferred_element_type=jnp.float32)
    h = jnp.maximum(h + b2_ref[...], 0.0)
    h = jnp.dot(h.astype(jnp.bfloat16), w2_ref[...],
                preferred_element_type=jnp.float32)
    h = jnp.maximum(h + b2_ref[...], 0.0)

    # fc4 (class dim zero-padded to CLS_PAD for lane-dense, unmasked stores).
    logits = jnp.dot(h.astype(jnp.bfloat16), w4_ref[...],
                     preferred_element_type=jnp.float32) + b4_ref[...]

    # log_softmax over the first `num_classes` columns only (padding masked out).
    col = jax.lax.broadcasted_iota(jnp.int32, logits.shape, dimension=1)
    valid = col < num_classes
    masked = jnp.where(valid, logits, -1e30)
    m = jnp.max(masked, axis=-1, keepdims=True)
    shifted = masked - m
    lse = jnp.log(jnp.sum(jnp.where(valid, jnp.exp(shifted), 0.0),
                          axis=-1, keepdims=True))
    o_ref[...] = (shifted - lse).astype(o_ref.dtype)


def _choose_tb(batch, max_tb=1024):
    """Batch tile: multiple of 16 (bf16 output sublane packing; also covers the
    8-row f32 input rule), as large as possible up to max_tb for DMA efficiency,
    but ~half the batch so the grid keeps >=2 steps (v7x has 2 TensorCores)."""
    return max(16, min(max_tb, _round_up(pl.cdiv(batch, 2), 16)))


def net_forward(x, kernel_params, *, max_block_b=1024):
    """x: (B, 784) f32 (or bf16).  kernel_params: output of prepare_params()."""
    w1, b1, w2, b2, w4, b4 = kernel_params
    B, F = x.shape
    assert F == IN_FEATURES

    TB = _choose_tb(B, max_block_b)
    B_pad = _round_up(B, TB)
    if B_pad != B:
        # Batch-row pad only when needed (no K-pad, no host dtype cast of x).
        x = jnp.pad(x, ((0, B_pad - B), (0, 0)))

    grid = (B_pad // TB,)
    out = pl.pallas_call(
        functools.partial(mlp_kernel, num_classes=NUM_CLASSES),
        out_shape=jax.ShapeDtypeStruct((B_pad, CLS_PAD), jnp.bfloat16),
        grid=grid,
        in_specs=[
            # x tile pipelines over the batch grid; 784 is the full last dim.
            pl.BlockSpec((TB, IN_FEATURES), lambda i: (i, 0)),
            # weights/biases: constant index_maps -> VMEM-resident across grid
            pl.BlockSpec(w1.shape, lambda i: (0, 0)),
            pl.BlockSpec(b1.shape, lambda i: (0, 0)),
            pl.BlockSpec(w2.shape, lambda i: (0, 0)),
            pl.BlockSpec(b2.shape, lambda i: (0, 0)),
            pl.BlockSpec(w4.shape, lambda i: (0, 0)),
            pl.BlockSpec(b4.shape, lambda i: (0, 0)),
        ],
        out_specs=pl.BlockSpec((TB, CLS_PAD), lambda i: (i, 0)),
        compiler_params=pltpu.CompilerParams(
            dimension_semantics=("parallel",)),   # shard batch across v7x's 2 TCs
    )(x, w1, b1, w2, b2, w4, b4)

    # Consumers that can accept the padded (B_pad, 128) bf16 slab should take
    # `out` directly; this slice/cast only serves the (B, 10) f32 interface of
    # the reference module.
    return out[:B, :NUM_CLASSES].astype(jnp.float32)


def init_params(key):
    """Deterministic init mimicking nn.Linear's U(-1/sqrt(fan_in), 1/sqrt(fan_in))."""
    def linear(key, fan_in, fan_out):
        kw, kb = jax.random.split(key)
        bound = 1.0 / jnp.sqrt(fan_in)
        w = jax.random.uniform(kw, (fan_in, fan_out), jnp.float32, -bound, bound)
        b = jax.random.uniform(kb, (1, fan_out), jnp.float32, -bound, bound)
        return w, b

    k1, k2, k3, k4 = jax.random.split(key, 4)
    w1, b1 = linear(k1, IN_FEATURES, HIDDEN)
    w2, b2 = linear(k2, HIDDEN, HIDDEN)
    _w3, _b3 = linear(k3, HIDDEN, HIDDEN)   # fc3: defined but unused in forward
    w4, b4 = linear(k4, HIDDEN, NUM_CLASSES)
    return (w1, b1, w2, b2, w4, b4)


def prepare_params(params):
    """Pad + cast params for the kernel:
      - w1: (784, 64) cast bf16 (no K padding)
      - w2: cast bf16
      - w4/b4: zero-pad class dim (10 -> 128); w4 cast bf16, b4 stays f32
      - biases stay f32 (tiny; keeps the VPU epilogue in f32 on v5e)
    """
    w1, b1, w2, b2, w4, b4 = params
    w4p = jnp.zeros((HIDDEN, CLS_PAD), jnp.float32).at[:, :NUM_CLASSES].set(w4)
    b4p = jnp.zeros((1, CLS_PAD), jnp.float32).at[:, :NUM_CLASSES].set(b4)
    return (w1.astype(jnp.bfloat16), b1,
            w2.astype(jnp.bfloat16), b2,
            w4p.astype(jnp.bfloat16), b4p)


def net_forward_ref_bf16(x, params):
    """Plain-JAX reference matching the kernel's numerics (bf16 operands,
    f32 accumulation) for a tight correctness check."""
    w1, b1, w2, b2, w4, b4 = params
    hp = jax.lax.Precision.HIGHEST

    def bf(a):
        return a.astype(jnp.bfloat16).astype(jnp.float32)

    h = jnp.maximum(jnp.dot(bf(x), bf(w1), precision=hp) + b1, 0.0)
    h = jnp.maximum(jnp.dot(bf(h), bf(w2), precision=hp) + b2, 0.0)
    h = jnp.maximum(jnp.dot(bf(h), bf(w2), precision=hp) + b2, 0.0)
    logits = jnp.dot(bf(h), bf(w4), precision=hp) + b4
    return jax.nn.log_softmax(logits, axis=1)


def net_forward_ref_f32(x, params):
    """Full-precision reference of the original module semantics."""
    w1, b1, w2, b2, w4, b4 = params
    hp = jax.lax.Precision.HIGHEST
    h = jnp.maximum(jnp.dot(x, w1, precision=hp) + b1, 0.0)
    h = jnp.maximum(jnp.dot(h, w2, precision=hp) + b2, 0.0)
    h = jnp.maximum(jnp.dot(h, w2, precision=hp) + b2, 0.0)
    logits = jnp.dot(h, w4, precision=hp) + b4
    return jax.nn.log_softmax(logits, axis=1)


if __name__ == "__main__":
    key = jax.random.PRNGKey(0)
    kp, kx, kx2 = jax.random.split(key, 3)
    params = init_params(kp)
    kernel_params = prepare_params(params)

    # Small demo batch (single grid step).
    B = 8
    x = jax.random.uniform(kx, (B, IN_FEATURES), jnp.float32)
    out = jax.block_until_ready(net_forward(x, kernel_params))
    assert out.shape == (B, NUM_CLASSES)

    # Tight check vs a bf16-matched reference (output is bf16 -> wider atol
    # than the old f32-output version).
    ref_bf16 = net_forward_ref_bf16(x, params)
    assert jnp.allclose(out, ref_bf16, atol=3e-2, rtol=2e-2), \
        float(jnp.max(jnp.abs(out - ref_bf16)))

    # Loose check vs the full-f32 module semantics (bf16 weight quantization +
    # bf16 output rounding introduce small, bounded deviation).
    ref_f32 = net_forward_ref_f32(x, params)
    assert jnp.allclose(out, ref_f32, atol=1e-1, rtol=5e-2), \
        float(jnp.max(jnp.abs(out - ref_f32)))

    # Exercise the multi-tile path (grid of 2 parallel steps: TB = 128).
    B2 = 256
    x2 = jax.random.uniform(kx2, (B2, IN_FEATURES), jnp.float32)
    out2 = jax.block_until_ready(net_forward(x2, kernel_params))
    assert out2.shape == (B2, NUM_CLASSES)
    ref2 = net_forward_ref_bf16(x2, params)
    assert jnp.allclose(out2, ref2, atol=3e-2, rtol=2e-2), \
        float(jnp.max(jnp.abs(out2 - ref2)))

    print("KERNEL_OK")
</pallas_src>

<mosaic_0001>
module attributes {stable_mosaic.version = 11 : i64} {
  func.func @mlp_kernel(%arg0: i32, %arg1: memref<16x784xf32, #tpu.memory_space<vmem>>, %arg2: memref<784x64xbf16, #tpu.memory_space<vmem>>, %arg3: memref<1x64xf32, #tpu.memory_space<vmem>>, %arg4: memref<64x64xbf16, #tpu.memory_space<vmem>>, %arg5: memref<1x64xf32, #tpu.memory_space<vmem>>, %arg6: memref<64x128xbf16, #tpu.memory_space<vmem>>, %arg7: memref<1x128xf32, #tpu.memory_space<vmem>>, %arg8: memref<16x128xbf16, #tpu.memory_space<vmem>>) attributes {dimension_semantics = [#tpu.dimension_semantics<parallel>], iteration_bounds = array<i64: 1>, scalar_prefetch = 0 : i64, scratch_operands = 0 : i64, tpu.core_type = #tpu.core_type<tc>, window_params = [{transform_indices = @transform_0, window_bounds = array<i64: 16, 784>}, {pipeline_mode = #tpu.pipeline_mode<synchronous>, transform_indices = @transform_1, window_bounds = array<i64: 784, 64>}, {pipeline_mode = #tpu.pipeline_mode<synchronous>, transform_indices = @transform_2, window_bounds = array<i64: 1, 64>}, {pipeline_mode = #tpu.pipeline_mode<synchronous>, transform_indices = @transform_3, window_bounds = array<i64: 64, 64>}, {pipeline_mode = #tpu.pipeline_mode<synchronous>, transform_indices = @transform_4, window_bounds = array<i64: 1, 64>}, {pipeline_mode = #tpu.pipeline_mode<synchronous>, transform_indices = @transform_5, window_bounds = array<i64: 64, 128>}, {pipeline_mode = #tpu.pipeline_mode<synchronous>, transform_indices = @transform_6, window_bounds = array<i64: 1, 128>}, {transform_indices = @transform_7, window_bounds = array<i64: 16, 128>}]} {
    %c0 = arith.constant 0 : index
    %c0_0 = arith.constant 0 : index
    %0 = vector.load %arg1[%c0, %c0_0] : memref<16x784xf32, #tpu.memory_space<vmem>>, vector<16x784xf32>
    %1 = arith.truncf %0 : vector<16x784xf32> to vector<16x784xbf16>
    %c0_1 = arith.constant 0 : index
    %c0_2 = arith.constant 0 : index
    %2 = vector.load %arg2[%c0_1, %c0_2] : memref<784x64xbf16, #tpu.memory_space<vmem>>, vector<784x64xbf16>
    %cst = arith.constant dense<0.000000e+00> : vector<16x64xf32>
    %3 = tpu.matmul %1, %2, %cst {dimension_numbers = #tpu.dot_dimension_numbers<[1], [0], [0], [1], [0, 0, 1, 1], [], []>} : vector<16x784xbf16>, vector<784x64xbf16>, vector<16x64xf32> -> vector<16x64xf32>
    %c0_3 = arith.constant 0 : index
    %c0_4 = arith.constant 0 : index
    %4 = vector.load %arg3[%c0_3, %c0_4] : memref<1x64xf32, #tpu.memory_space<vmem>>, vector<1x64xf32>
    %5 = vector.broadcast %4 : vector<1x64xf32> to vector<16x64xf32>
    %6 = arith.addf %3, %5 : vector<16x64xf32>
    %cst_5 = arith.constant 0.000000e+00 : f32
    %7 = vector.broadcast %cst_5 : f32 to vector<16x64xf32>
    %8 = arith.maximumf %6, %7 : vector<16x64xf32>
    %9 = arith.truncf %8 : vector<16x64xf32> to vector<16x64xbf16>
    %c0_6 = arith.constant 0 : index
    %c0_7 = arith.constant 0 : index
    %10 = vector.load %arg4[%c0_6, %c0_7] : memref<64x64xbf16, #tpu.memory_space<vmem>>, vector<64x64xbf16>
    %cst_8 = arith.constant dense<0.000000e+00> : vector<16x64xf32>
    %11 = tpu.matmul %9, %10, %cst_8 {dimension_numbers = #tpu.dot_dimension_numbers<[1], [0], [0], [1], [0, 0, 1, 1], [], []>} : vector<16x64xbf16>, vector<64x64xbf16>, vector<16x64xf32> -> vector<16x64xf32>
    %c0_9 = arith.constant 0 : index
    %c0_10 = arith.constant 0 : index
    %12 = vector.load %arg5[%c0_9, %c0_10] : memref<1x64xf32, #tpu.memory_space<vmem>>, vector<1x64xf32>
    %13 = vector.broadcast %12 : vector<1x64xf32> to vector<16x64xf32>
    %14 = arith.addf %11, %13 : vector<16x64xf32>
    %cst_11 = arith.constant 0.000000e+00 : f32
    %15 = vector.broadcast %cst_11 : f32 to vector<16x64xf32>
    %16 = arith.maximumf %14, %15 : vector<16x64xf32>
    %17 = arith.truncf %16 : vector<16x64xf32> to vector<16x64xbf16>
    %c0_12 = arith.constant 0 : index
    %c0_13 = arith.constant 0 : index
    %18 = vector.load %arg4[%c0_12, %c0_13] : memref<64x64xbf16, #tpu.memory_space<vmem>>, vector<64x64xbf16>
    %cst_14 = arith.constant dense<0.000000e+00> : vector<16x64xf32>
    %19 = tpu.matmul %17, %18, %cst_14 {dimension_numbers = #tpu.dot_dimension_numbers<[1], [0], [0], [1], [0, 0, 1, 1], [], []>} : vector<16x64xbf16>, vector<64x64xbf16>, vector<16x64xf32> -> vector<16x64xf32>
    %c0_15 = arith.constant 0 : index
    %c0_16 = arith.constant 0 : index
    %20 = vector.load %arg5[%c0_15, %c0_16] : memref<1x64xf32, #tpu.memory_space<vmem>>, vector<1x64xf32>
    %21 = vector.broadcast %20 : vector<1x64xf32> to vector<16x64xf32>
    %22 = arith.addf %19, %21 : vector<16x64xf32>
    %cst_17 = arith.constant 0.000000e+00 : f32
    %23 = vector.broadcast %cst_17 : f32 to vector<16x64xf32>
    %24 = arith.maximumf %22, %23 : vector<16x64xf32>
    %25 = arith.truncf %24 : vector<16x64xf32> to vector<16x64xbf16>
    %c0_18 = arith.constant 0 : index
    %c0_19 = arith.constant 0 : index
    %26 = vector.load %arg6[%c0_18, %c0_19] : memref<64x128xbf16, #tpu.memory_space<vmem>>, vector<64x128xbf16>
    %cst_20 = arith.constant dense<0.000000e+00> : vector<16x128xf32>
    %27 = tpu.matmul %25, %26, %cst_20 {dimension_numbers = #tpu.dot_dimension_numbers<[1], [0], [0], [1], [0, 0, 1, 1], [], []>} : vector<16x64xbf16>, vector<64x128xbf16>, vector<16x128xf32> -> vector<16x128xf32>
    %c0_21 = arith.constant 0 : index
    %c0_22 = arith.constant 0 : index
    %28 = vector.load %arg7[%c0_21, %c0_22] : memref<1x128xf32, #tpu.memory_space<vmem>>, vector<1x128xf32>
    %29 = vector.broadcast %28 : vector<1x128xf32> to vector<16x128xf32>
    %30 = arith.addf %27, %29 : vector<16x128xf32>
    %31 = tpu.iota {dimensions = array<i32: 1>} : vector<16x128xi32>
    %c10_i32 = arith.constant 10 : i32
    %32 = vector.broadcast %c10_i32 : i32 to vector<16x128xi32>
    %33 = arith.cmpi slt, %31, %32 : vector<16x128xi32>
    %cst_23 = arith.constant -1.000000e+30 : f32
    %34 = vector.broadcast %cst_23 : f32 to vector<16x128xf32>
    %35 = arith.select %33, %30, %34 : vector<16x128xi1>, vector<16x128xf32>
    %cst_24 = arith.constant dense<0xFF800000> : vector<16xf32>
    %36 = vector.multi_reduction <maximumf>, %35, %cst_24 [1] : vector<16x128xf32> to vector<16xf32>
    %37 = vector.shape_cast %36 : vector<16xf32> to vector<16x1xf32>
    %38 = vector.broadcast %37 : vector<16x1xf32> to vector<16x128xf32>
    %39 = arith.subf %35, %38 : vector<16x128xf32>
    %40 = math.exp %39 : vector<16x128xf32>
    %cst_25 = arith.constant 0.000000e+00 : f32
    %41 = vector.broadcast %cst_25 : f32 to vector<16x128xf32>
    %42 = arith.select %33, %40, %41 : vector<16x128xi1>, vector<16x128xf32>
    %cst_26 = arith.constant dense<0.000000e+00> : vector<16xf32>
    %43 = vector.multi_reduction <add>, %42, %cst_26 [1] : vector<16x128xf32> to vector<16xf32>
    %44 = vector.shape_cast %43 : vector<16xf32> to vector<16x1xf32>
    %45 = math.log %44 : vector<16x1xf32>
    %46 = vector.broadcast %45 : vector<16x1xf32> to vector<16x128xf32>
    %47 = arith.subf %39, %46 : vector<16x128xf32>
    %48 = arith.truncf %47 : vector<16x128xf32> to vector<16x128xbf16>
    %c0_27 = arith.constant 0 : index
    %c0_28 = arith.constant 0 : index
    %49 = vector.load %arg8[%c0_27, %c0_28] : memref<16x128xbf16, #tpu.memory_space<vmem>>, vector<16x128xbf16>
    tpu.vector_store %arg8[%c0_27, %c0_28], %48 {strides = array<i32>} : memref<16x128xbf16, #tpu.memory_space<vmem>>, vector<16x128xbf16>,
    return
  }
  func.func @transform_0(%arg0: i32) -> (i32, i32) {
    %c0_i32 = arith.constant 0 : i32
    %c0_i32_0 = arith.constant 0 : i32
    return %arg0, %c0_i32 : i32, i32
  }
  func.func @transform_1(%arg0: i32) -> (i32, i32) {
    %c0_i32 = arith.constant 0 : i32
    %c0_i32_0 = arith.constant 0 : i32
    %c0_i32_1 = arith.constant 0 : i32
    return %c0_i32, %c0_i32_0 : i32, i32
  }
  func.func @transform_2(%arg0: i32) -> (i32, i32) {
    %c0_i32 = arith.constant 0 : i32
    %c0_i32_0 = arith.constant 0 : i32
    %c0_i32_1 = arith.constant 0 : i32
    return %c0_i32, %c0_i32_0 : i32, i32
  }
  func.func @transform_3(%arg0: i32) -> (i32, i32) {
    %c0_i32 = arith.constant 0 : i32
    %c0_i32_0 = arith.constant 0 : i32
    %c0_i32_1 = arith.constant 0 : i32
    return %c0_i32, %c0_i32_0 : i32, i32
  }
  func.func @transform_4(%arg0: i32) -> (i32, i32) {
    %c0_i32 = arith.constant 0 : i32
    %c0_i32_0 = arith.constant 0 : i32
    %c0_i32_1 = arith.constant 0 : i32
    return %c0_i32, %c0_i32_0 : i32, i32
  }
  func.func @transform_5(%arg0: i32) -> (i32, i32) {
    %c0_i32 = arith.constant 0 : i32
    %c0_i32_0 = arith.constant 0 : i32
    %c0_i32_1 = arith.constant 0 : i32
    return %c0_i32, %c0_i32_0 : i32, i32
  }
  func.func @transform_6(%arg0: i32) -> (i32, i32) {
    %c0_i32 = arith.constant 0 : i32
    %c0_i32_0 = arith.constant 0 : i32
    %c0_i32_1 = arith.constant 0 : i32
    return %c0_i32, %c0_i32_0 : i32, i32
  }
  func.func @transform_7(%arg0: i32) -> (i32, i32) {
    %c0_i32 = arith.constant 0 : i32
    %c0_i32_0 = arith.constant 0 : i32
    return %arg0, %c0_i32 : i32, i32
  }
}

</mosaic_0001>

<llo_original>
// kernel: tpu_custom_call.1
$region0: #{tpu_custom_call.1}
  #allocation0 [shape = 'u32[]', space=smem, size = 0x4, offset = 0x4, fixed_abs, tag = 'smem constant byte address 0x4 - core index']
  #allocation1 [shape = 'u32[144,128]{1,0:T(1,128)}', space=vmem, size = 0x12000, scoped, tag = 'internal scratch']
  %s0 = inlined_call_operand.vmem [shape: f32[16,784], index: 0, kind: input, shape index: {}]
  %s1 = inlined_call_operand.vmem [shape: bf16[784,64], index: 1, kind: input, shape index: {}]
  %s2 = inlined_call_operand.vmem [shape: f32[1,64], index: 2, kind: input, shape index: {}]
  %s3 = inlined_call_operand.vmem [shape: bf16[64,64], index: 3, kind: input, shape index: {}]
  %s4 = inlined_call_operand.vmem [shape: f32[1,64], index: 4, kind: input, shape index: {}]
  %s5 = inlined_call_operand.vmem [shape: bf16[64,128], index: 5, kind: input, shape index: {}]
  %s6 = inlined_call_operand.vmem [shape: f32[1,128], index: 6, kind: input, shape index: {}]
  %s7 = inlined_call_operand.hbm [shape: bf16[16,128], index: 7, kind: output, shape index: {}]
  %s8 = sld [smem:[#allocation0]]
  $region38: #{tpu_custom_call.1} parent=0
    _
  %s10 = ssub.s32 1, %s8
  %s11 = scalar_select 0, %s10, %s8
  $region1: #{tpu_custom_call.1} parent=0
    #allocation2 [shape = 'u8[4096]{0}', space=vmem, size = 0x1000, scoped, tag = 'output window, operand 0, single buffered']
    #allocation3 [shape = 's32[1]{0}', space=sflag, size = 0x4, scoped, tag = 'scoped memory for tpu_custom_call.1']
    %12 = vsyncpa [#allocation3], 0
    // Predicated region
    $region2: #{tpu_custom_call.1} parent=1 // pred_check
      _
    $region3: #{tpu_custom_call.1} parent=1 // pred_check_branch
      %14 = sbr.rel (0) target = $region5
    $region4: #{tpu_custom_call.1} parent=1 // pred_region
      _
    $region5: #{tpu_custom_call.1} parent=1 // pred_fallthru
      _
    // Predicated region
    $region6: #{tpu_custom_call.1} parent=1 // pred_check
      _
    $region7: #{tpu_custom_call.1} parent=1 // pred_check_branch
      %16 = sbr.rel (0) target = $region9
    $region8: #{tpu_custom_call.1} parent=1 // pred_region
      _
    $region9: #{tpu_custom_call.1} parent=1 // pred_fallthru
      _
    // Predicated region
    $region10: #{tpu_custom_call.1} parent=1 // pred_check
      _
    $region11: #{tpu_custom_call.1} parent=1 // pred_check_branch
      %18 = sbr.rel (0) target = $region13
    $region12: #{tpu_custom_call.1} parent=1 // pred_region
      _
    $region13: #{tpu_custom_call.1} parent=1 // pred_fallthru
      _
    // Predicated region
    $region14: #{tpu_custom_call.1} parent=1 // pred_check
      _
    $region15: #{tpu_custom_call.1} parent=1 // pred_check_branch
      %20 = sbr.rel (0) target = $region17
    $region16: #{tpu_custom_call.1} parent=1 // pred_region
      _
    $region17: #{tpu_custom_call.1} parent=1 // pred_fallthru
      _
    // Predicated region
    $region18: #{tpu_custom_call.1} parent=1 // pred_check
      _
    $region19: #{tpu_custom_call.1} parent=1 // pred_check_branch
      %22 = sbr.rel (0) target = $region21
    $region20: #{tpu_custom_call.1} parent=1 // pred_region
      _
    $region21: #{tpu_custom_call.1} parent=1 // pred_fallthru
      _
    // Predicated region
    $region22: #{tpu_custom_call.1} parent=1 // pred_check
      _
    $region23: #{tpu_custom_call.1} parent=1 // pred_check_branch
      %24 = sbr.rel (0) target = $region25
    $region24: #{tpu_custom_call.1} parent=1 // pred_region
      _
    $region25: #{tpu_custom_call.1} parent=1 // pred_fallthru
      _
    // Predicated region
    $region26: #{tpu_custom_call.1} parent=1 // pred_check
      _
    $region27: #{tpu_custom_call.1} parent=1 // pred_check_branch
      %26 = sbr.rel (0) target = $region29
    $region28: #{tpu_custom_call.1} parent=1 // pred_region
      _
    $region29: #{tpu_custom_call.1} parent=1 // pred_fallthru
      _
    %v28 = vld [vmem:[%s0] sm:$0xff]
    %v29 = vld [vmem:[%s0 + $0x8] sm:$0xff]
    %v30 = vld [vmem:[%s0 + $0x10] sm:$0xff]
    %v31 = vld [vmem:[%s0 + $0x18] sm:$0xff]
    %v32 = vld [vmem:[%s0 + $0x20] sm:$0xff]
    %v33 = vld [vmem:[%s0 + $0x28] sm:$0xff]
    %v34 = vld [vmem:[%s0 + $0x30] sm:$0xff]
    %v35 = vld [vmem:[%s0 + $0x38] sm:$0xff]
    %v36 = vld [vmem:[%s0 + $0x40] sm:$0xff]
    %v37 = vld [vmem:[%s0 + $0x48] sm:$0xff]
    %v38 = vld [vmem:[%s0 + $0x50] sm:$0xff]
    %v39 = vld [vmem:[%s0 + $0x58] sm:$0xff]
    %v40 = vld [vmem:[%s0 + $0x60] sm:$0xff]
    %v41 = vld [vmem:[%s0 + $0x68] sm:$0xff]
    %v42 = vpack.c.bf16 %v35, %v28
    %v43 = vpack.c.bf16 %v36, %v29
    %v44 = vpack.c.bf16 %v37, %v30
    %v45 = vpack.c.bf16 %v38, %v31
    %v46 = vpack.c.bf16 %v39, %v32
    %v47 = vpack.c.bf16 %v40, %v33
    %v48 = vpack.c.bf16 %v41, %v34
    %v49 = vld [vmem:[%s1] sm:$0xf]
    %v50 = vld [vmem:[%s1 + $0x4] sm:$0xf]
    %v51 = vld [vmem:[%s1 + $0x8] sm:$0xf]
    %v52 = vld [vmem:[%s1 + $0xc] sm:$0xf]
    %v53 = vld [vmem:[%s1 + $0x10] sm:$0xf]
    %v54 = vld [vmem:[%s1 + $0x14] sm:$0xf]
    %v55 = vld [vmem:[%s1 + $0x18] sm:$0xf]
    %v56 = vld [vmem:[%s1 + $0x1c] sm:$0xf]
    %v57 = vld [vmem:[%s1 + $0x20] sm:$0xf]
    %v58 = vld [vmem:[%s1 + $0x24] sm:$0xf]
    %v59 = vld [vmem:[%s1 + $0x28] sm:$0xf]
    %v60 = vld [vmem:[%s1 + $0x2c] sm:$0xf]
    %v61 = vld [vmem:[%s1 + $0x30] sm:$0xf]
    %v62 = vld [vmem:[%s1 + $0x34] sm:$0xf]
    %v63 = vld [vmem:[%s1 + $0x38] sm:$0xf]
    %v64 = vld [vmem:[%s1 + $0x3c] sm:$0xf]
    %v65 = vld [vmem:[%s1 + $0x40] sm:$0xf]
    %v66 = vld [vmem:[%s1 + $0x44] sm:$0xf]
    %v67 = vld [vmem:[%s1 + $0x48] sm:$0xf]
    %v68 = vld [vmem:[%s1 + $0x4c] sm:$0xf]
    %v69 = vld [vmem:[%s1 + $0x50] sm:$0xf]
    %v70 = vld [vmem:[%s1 + $0x54] sm:$0xf]
    %v71 = vld [vmem:[%s1 + $0x58] sm:$0xf]
    %v72 = vld [vmem:[%s1 + $0x5c] sm:$0xf]
    %v73 = vld [vmem:[%s1 + $0x60] sm:$0xf]
    %v74 = vld [vmem:[%s1 + $0x64] sm:$0xf]
    %v75 = vld [vmem:[%s1 + $0x68] sm:$0xf]
    %v76 = vld [vmem:[%s1 + $0x6c] sm:$0xf]
    %v77 = vld [vmem:[%s1 + $0x70] sm:$0xf]
    %v78 = vld [vmem:[%s1 + $0x74] sm:$0xf]
    %v79 = vld [vmem:[%s1 + $0x78] sm:$0xf]
    %v80 = vld [vmem:[%s1 + $0x7c] sm:$0xf]
    %v81 = vld [vmem:[%s1 + $0x80] sm:$0xf]
    %v82 = vld [vmem:[%s1 + $0x84] sm:$0xf]
    %v83 = vld [vmem:[%s1 + $0x88] sm:$0xf]
    %v84 = vld [vmem:[%s1 + $0x8c] sm:$0xf]
    %v85 = vld [vmem:[%s1 + $0x90] sm:$0xf]
    %v86 = vld [vmem:[%s1 + $0x94] sm:$0xf]
    %v87 = vld [vmem:[%s1 + $0x98] sm:$0xf]
    %v88 = vld [vmem:[%s1 + $0x9c] sm:$0xf]
    %v89 = vld [vmem:[%s1 + $0xa0] sm:$0xf]
    %v90 = vld [vmem:[%s1 + $0xa4] sm:$0xf]
    %v91 = vld [vmem:[%s1 + $0xa8] sm:$0xf]
    %v92 = vld [vmem:[%s1 + $0xac] sm:$0xf]
    %v93 = vld [vmem:[%s1 + $0xb0] sm:$0xf]
    %v94 = vld [vmem:[%s1 + $0xb4] sm:$0xf]
    %v95 = vld [vmem:[%s1 + $0xb8] sm:$0xf]
    %v96 = vld [vmem:[%s1 + $0xbc] sm:$0xf]
    %v97 = vld [vmem:[%s1 + $0xc0] sm:$0xf]
    %v98 = vld [vmem:[%s1 + $0xc4] sm:$0xf]
    %v99 = vld [vmem:[%s1 + $0xc8] sm:$0xf]
    %v100 = vld [vmem:[%s1 + $0xcc] sm:$0xf]
    %v101 = vld [vmem:[%s1 + $0xd0] sm:$0xf]
    %v102 = vld [vmem:[%s1 + $0xd4] sm:$0xf]
    %v103 = vld [vmem:[%s1 + $0xd8] sm:$0xf]
    %v104 = vld [vmem:[%s1 + $0xdc] sm:$0xf]
    %v105 = vld [vmem:[%s1 + $0xe0] sm:$0xf]
    %v106 = vld [vmem:[%s1 + $0xe4] sm:$0xf]
    %v107 = vld [vmem:[%s1 + $0xe8] sm:$0xf]
    %v108 = vld [vmem:[%s1 + $0xec] sm:$0xf]
    %v109 = vld [vmem:[%s1 + $0xf0] sm:$0xf]
    %v110 = vld [vmem:[%s1 + $0xf4] sm:$0xf]
    %v111 = vld [vmem:[%s1 + $0xf8] sm:$0xf]
    %v112 = vld [vmem:[%s1 + $0xfc] sm:$0xf]
    %v113 = vld [vmem:[%s1 + $0x100] sm:$0xf]
    %v114 = vld [vmem:[%s1 + $0x104] sm:$0xf]
    %v115 = vld [vmem:[%s1 + $0x108] sm:$0xf]
    %v116 = vld [vmem:[%s1 + $0x10c] sm:$0xf]
    %v117 = vld [vmem:[%s1 + $0x110] sm:$0xf]
    %v118 = vld [vmem:[%s1 + $0x114] sm:$0xf]
    %v119 = vld [vmem:[%s1 + $0x118] sm:$0xf]
    %v120 = vld [vmem:[%s1 + $0x11c] sm:$0xf]
    %v121 = vld [vmem:[%s1 + $0x120] sm:$0xf]
    %v122 = vld [vmem:[%s1 + $0x124] sm:$0xf]
    %v123 = vld [vmem:[%s1 + $0x128] sm:$0xf]
    %v124 = vld [vmem:[%s1 + $0x12c] sm:$0xf]
    %v125 = vld [vmem:[%s1 + $0x130] sm:$0xf]
    %v126 = vld [vmem:[%s1 + $0x134] sm:$0xf]
    %v127 = vld [vmem:[%s1 + $0x138] sm:$0xf]
    %v128 = vld [vmem:[%s1 + $0x13c] sm:$0xf]
    %v129 = vld [vmem:[%s1 + $0x140] sm:$0xf]
    %v130 = vld [vmem:[%s1 + $0x144] sm:$0xf]
    %v131 = vld [vmem:[%s1 + $0x148] sm:$0xf]
    %v132 = vld [vmem:[%s1 + $0x14c] sm:$0xf]
    %v133 = vld [vmem:[%s1 + $0x150] sm:$0xf]
    %v134 = vld [vmem:[%s1 + $0x154] sm:$0xf]
    %v135 = vld [vmem:[%s1 + $0x158] sm:$0xf]
    %v136 = vld [vmem:[%s1 + $0x15c] sm:$0xf]
    %v137 = vld [vmem:[%s1 + $0x160] sm:$0xf]
    %v138 = vld [vmem:[%s1 + $0x164] sm:$0xf]
    %v139 = vld [vmem:[%s1 + $0x168] sm:$0xf]
    %v140 = vld [vmem:[%s1 + $0x16c] sm:$0xf]
    %v141 = vld [vmem:[%s1 + $0x170] sm:$0xf]
    %v142 = vld [vmem:[%s1 + $0x174] sm:$0xf]
    %v143 = vld [vmem:[%s1 + $0x178] sm:$0xf]
    %v144 = vld [vmem:[%s1 + $0x17c] sm:$0xf]
    %v145 = vld [vmem:[%s1 + $0x180] sm:$0xf]
    %v146 = vld [vmem:[%s1 + $0x184] sm:$0xf]
    %v147 = vld [vmem:[%s2] sm:$0x1]
    %v149 = vlaneseq
    %v150 = vshrl.u32 %v149, 7
    %v151 = vsub.s32 0, %v150
    %v152 = vrot.slane %v147, %v151
    %v252 = vunpack.c.l.b16 %v49
    %v253 = vunpack.c.l.b16 %v50
    %v254 = vunpack.c.l.b16 %v51
    %v255 = vunpack.c.l.b16 %v52
    %v256 = vunpack.c.l.b16 %v53
    %v257 = vunpack.c.l.b16 %v54
    %v258 = vunpack.c.l.b16 %v55
    %v259 = vunpack.c.l.b16 %v56
    %v260 = vunpack.c.l.b16 %v57
    %v261 = vunpack.c.l.b16 %v58
    %v262 = vunpack.c.l.b16 %v59
    %v263 = vunpack.c.l.b16 %v60
    %v264 = vunpack.c.l.b16 %v61
    %v265 = vunpack.c.l.b16 %v62
    %v266 = vunpack.c.l.b16 %v63
    %v267 = vunpack.c.l.b16 %v64
    %v268 = vunpack.c.l.b16 %v65
    %v269 = vunpack.c.l.b16 %v66
    %v270 = vunpack.c.l.b16 %v67
    %v271 = vunpack.c.l.b16 %v68
    %v272 = vunpack.c.l.b16 %v69
    %v273 = vunpack.c.l.b16 %v70
    %v274 = vunpack.c.l.b16 %v71
    %v275 = vunpack.c.l.b16 %v72
    %v276 = vunpack.c.l.b16 %v73
    %v277 = vunpack.c.l.b16 %v74
    %v278 = vunpack.c.l.b16 %v75
    %v279 = vunpack.c.l.b16 %v76
    %v280 = vunpack.c.l.b16 %v77
    %v281 = vunpack.c.l.b16 %v78
    %v282 = vunpack.c.l.b16 %v79
    %v283 = vunpack.c.l.b16 %v80
    %v284 = vunpack.c.l.b16 %v81
    %v285 = vunpack.c.l.b16 %v82
    %v286 = vunpack.c.l.b16 %v83
    %v287 = vunpack.c.l.b16 %v84
    %v288 = vunpack.c.l.b16 %v85
    %v289 = vunpack.c.l.b16 %v86
    %v290 = vunpack.c.l.b16 %v87
    %v291 = vunpack.c.l.b16 %v88
    %v292 = vunpack.c.l.b16 %v89
    %v293 = vunpack.c.l.b16 %v90
    %v294 = vunpack.c.l.b16 %v91
    %v295 = vunpack.c.l.b16 %v92
    %v296 = vunpack.c.l.b16 %v93
    %v297 = vunpack.c.l.b16 %v94
    %v298 = vunpack.c.l.b16 %v95
    %v299 = vunpack.c.l.b16 %v96
    %v300 = vunpack.c.l.b16 %v97
    %v301 = vunpack.c.l.b16 %v98
    %v302 = vunpack.c.l.b16 %v99
    %v303 = vunpack.c.l.b16 %v100
    %v304 = vunpack.c.l.b16 %v101
    %v305 = vunpack.c.l.b16 %v102
    %v306 = vunpack.c.l.b16 %v103
    %v307 = vunpack.c.l.b16 %v104
    %v308 = vunpack.c.l.b16 %v105
    %v309 = vunpack.c.l.b16 %v106
    %v310 = vunpack.c.l.b16 %v107
    %v311 = vunpack.c.l.b16 %v108
    %v312 = vunpack.c.l.b16 %v109
    %v313 = vunpack.c.l.b16 %v110
    %v314 = vunpack.c.l.b16 %v111
    %v315 = vunpack.c.l.b16 %v112
    %v316 = vunpack.c.l.b16 %v113
    %v317 = vunpack.c.l.b16 %v114
    %v318 = vunpack.c.l.b16 %v115
    %v319 = vunpack.c.l.b16 %v116
    %v320 = vunpack.c.l.b16 %v117
    %v321 = vunpack.c.l.b16 %v118
    %v322 = vunpack.c.l.b16 %v119
    %v323 = vunpack.c.l.b16 %v120
    %v324 = vunpack.c.l.b16 %v121
    %v325 = vunpack.c.l.b16 %v122
    %v326 = vunpack.c.l.b16 %v123
    %v327 = vunpack.c.l.b16 %v124
    %v328 = vunpack.c.l.b16 %v125
    %v329 = vunpack.c.l.b16 %v126
    %v330 = vunpack.c.l.b16 %v127
    %v331 = vunpack.c.l.b16 %v128
    %v332 = vunpack.c.l.b16 %v129
    %v333 = vunpack.c.l.b16 %v130
    %v334 = vunpack.c.l.b16 %v131
    %v335 = vunpack.c.l.b16 %v132
    %v336 = vunpack.c.l.b16 %v133
    %v337 = vunpack.c.l.b16 %v134
    %v338 = vunpack.c.l.b16 %v135
    %v339 = vunpack.c.l.b16 %v136
    %v340 = vunpack.c.l.b16 %v137
    %v341 = vunpack.c.l.b16 %v138
    %v342 = vunpack.c.l.b16 %v139
    %v343 = vunpack.c.l.b16 %v140
    %v344 = vunpack.c.l.b16 %v141
    %v345 = vunpack.c.l.b16 %v142
    %v346 = vunpack.c.l.b16 %v143
    %v347 = vunpack.c.l.b16 %v144
    %v348 = vunpack.c.l.b16 %v145
    %v349 = vunpack.c.l.b16 %v146
    %v350 = vpack.c.b16 %v253, %v252
    %v351 = vpack.c.b16 %v255, %v254
    %v352 = vpack.c.b16 %v257, %v256
    %v353 = vpack.c.b16 %v259, %v258
    %v354 = vpack.c.b16 %v261, %v260
    %v355 = vpack.c.b16 %v263, %v262
    %v356 = vpack.c.b16 %v265, %v264
    %v357 = vpack.c.b16 %v267, %v266
    %v358 = vpack.c.b16 %v269, %v268
    %v359 = vpack.c.b16 %v271, %v270
    %v360 = vpack.c.b16 %v273, %v272
    %v361 = vpack.c.b16 %v275, %v274
    %v362 = vpack.c.b16 %v277, %v276
    %v363 = vpack.c.b16 %v279, %v278
    %v364 = vpack.c.b16 %v281, %v280
    %v365 = vpack.c.b16 %v283, %v282
    %v366 = vpack.c.b16 %v285, %v284
    %v367 = vpack.c.b16 %v287, %v286
    %v368 = vpack.c.b16 %v289, %v288
    %v369 = vpack.c.b16 %v291, %v290
    %v370 = vpack.c.b16 %v293, %v292
    %v371 = vpack.c.b16 %v295, %v294
    %v372 = vpack.c.b16 %v297, %v296
    %v373 = vpack.c.b16 %v299, %v298
    %v374 = vpack.c.b16 %v301, %v300
    %v375 = vpack.c.b16 %v303, %v302
    %v376 = vpack.c.b16 %v305, %v304
    %v377 = vpack.c.b16 %v307, %v306
    %v378 = vpack.c.b16 %v309, %v308
    %v379 = vpack.c.b16 %v311, %v310
    %v380 = vpack.c.b16 %v313, %v312
    %v381 = vpack.c.b16 %v315, %v314
    %v382 = vpack.c.b16 %v317, %v316
    %v383 = vpack.c.b16 %v319, %v318
    %v384 = vpack.c.b16 %v321, %v320
    %v385 = vpack.c.b16 %v323, %v322
    %v386 = vpack.c.b16 %v325, %v324
    %v387 = vpack.c.b16 %v327, %v326
    %v388 = vpack.c.b16 %v329, %v328
    %v389 = vpack.c.b16 %v331, %v330
    %v390 = vpack.c.b16 %v333, %v332
    %v391 = vpack.c.b16 %v335, %v334
    %v392 = vpack.c.b16 %v337, %v336
    %v393 = vpack.c.b16 %v339, %v338
    %v394 = vpack.c.b16 %v341, %v340
    %v395 = vpack.c.b16 %v343, %v342
    %v396 = vpack.c.b16 %v345, %v344
    %v397 = vpack.c.b16 %v347, %v346
    %v398 = vpack.c.b16 %v349, %v348
    %vm448 = vcmask 130048
    %v450 = vsel %vm448, %v48, 0
    %452 = vmatprep.subr.bf16.mxu0 0
    %453 = vmatpush1.bf16.msra.mxu0 %v350
    %454 = vmatprep.subr.bf16.mxu0 0
    %455 = vmatpush1.bf16.msra.mxu0 %v351
    %456 = vmatprep.subr.bf16.mxu0 0
    %457 = vmatpush1.bf16.msra.mxu0 %v352
    %458 = vmatprep.subr.bf16.mxu0 0
    %459 = vmatpush1.bf16.msra.mxu0 %v353
    %460 = vmatprep.subr.bf16.mxu0 0
    %461 = vmatpush1.bf16.msra.mxu0 %v354
    %462 = vmatprep.subr.bf16.mxu0 0
    %463 = vmatpush1.bf16.msra.mxu0 %v355
    %464 = vmatprep.subr.bf16.mxu0 0
    %465 = vmatpush1.bf16.msra.mxu0 %v356
    %466 = vmatprep.subr.bf16.mxu0 0
    %467 = vmatpush1.bf16.msra.mxu0 %v357
    %468 = vmatprep.subr.bf16.mxu0 0
    %469 = vmatpush1.bf16.msra.mxu0 %v358
    %470 = vmatprep.subr.bf16.mxu0 0
    %471 = vmatpush1.bf16.msra.mxu0 %v359
    %472 = vmatprep.subr.bf16.mxu0 0
    %473 = vmatpush1.bf16.msra.mxu0 %v360
    %474 = vmatprep.subr.bf16.mxu0 0
    %475 = vmatpush1.bf16.msra.mxu0 %v361
    %476 = vmatprep.subr.bf16.mxu0 0
    %477 = vmatpush1.bf16.msra.mxu0 %v362
    %478 = vmatprep.subr.bf16.mxu0 0
    %479 = vmatpush1.bf16.msra.mxu0 %v363
    %480 = vmatprep.subr.bf16.mxu0 0
    %481 = vmatpush1.bf16.msra.mxu0 %v364
    %482 = vmatprep.subr.bf16.mxu0 0
    %483 = vmatpush1.bf16.msra.mxu0 %v365
    %484 = vmatprep.mubr.bf16.mxu0 %v43
    %485 = vmatmul.mubr.bf16.gmra.mrb[0].mxu0 %v42
    %v486 = vpop.f32.mrb[0].mxu0
    %v487 = vadd.f32 %v152, %v486
    %v488 = vpop.f32.mrb[0].mxu0
    %v489 = vpop.f32.mrb[0].mxu0
    %v490 = vadd.f32 %v152, %v489
    %v491 = vpop.f32.mrb[0].mxu0
    %492 = vdwg.mxu0
    %493 = vmatprep.subr.bf16.mxu0 0
    %494 = vmatpush1.bf16.msra.mxu0 %v366
    %495 = vmatprep.subr.bf16.mxu0 0
    %496 = vmatpush1.bf16.msra.mxu0 %v367
    %497 = vmatprep.subr.bf16.mxu0 0
    %498 = vmatpush1.bf16.msra.mxu0 %v368
    %499 = vmatprep.subr.bf16.mxu0 0
    %500 = vmatpush1.bf16.msra.mxu0 %v369
    %501 = vmatprep.subr.bf16.mxu0 0
    %502 = vmatpush1.bf16.msra.mxu0 %v370
    %503 = vmatprep.subr.bf16.mxu0 0
    %504 = vmatpush1.bf16.msra.mxu0 %v371
    %505 = vmatprep.subr.bf16.mxu0 0
    %506 = vmatpush1.bf16.msra.mxu0 %v372
    %507 = vmatprep.subr.bf16.mxu0 0
    %508 = vmatpush1.bf16.msra.mxu0 %v373
    %509 = vmatprep.subr.bf16.mxu0 0
    %510 = vmatpush1.bf16.msra.mxu0 %v374
    %511 = vmatprep.subr.bf16.mxu0 0
    %512 = vmatpush1.bf16.msra.mxu0 %v375
    %513 = vmatprep.subr.bf16.mxu0 0
    %514 = vmatpush1.bf16.msra.mxu0 %v376
    %515 = vmatprep.subr.bf16.mxu0 0
    %516 = vmatpush1.bf16.msra.mxu0 %v377
    %517 = vmatprep.subr.bf16.mxu0 0
    %518 = vmatpush1.bf16.msra.mxu0 %v378
    %519 = vmatprep.subr.bf16.mxu0 0
    %520 = vmatpush1.bf16.msra.mxu0 %v379
    %521 = vmatprep.subr.bf16.mxu0 0
    %522 = vmatpush1.bf16.msra.mxu0 %v380
    %523 = vmatprep.subr.bf16.mxu0 0
    %524 = vmatpush1.bf16.msra.mxu0 %v381
    %525 = vmatprep.mubr.bf16.mxu0 %v45
    %526 = vmatmul.mubr.bf16.gmra.mrb[0].mxu0 %v44
    %v527 = vpop.f32.mrb[0].mxu0
    %v528 = vadd.f32 %v487, %v527
    %v529 = vpop.f32.mrb[0].mxu0
    %v530 = vpop.f32.mrb[0].mxu0
    %v531 = vadd.f32 %v490, %v530
    %v532 = vpop.f32.mrb[0].mxu0
    %533 = vdwg.mxu0
    %534 = vmatprep.subr.bf16.mxu0 0
    %535 = vmatpush1.bf16.msra.mxu0 %v382
    %536 = vmatprep.subr.bf16.mxu0 0
    %537 = vmatpush1.bf16.msra.mxu0 %v383
    %538 = vmatprep.subr.bf16.mxu0 0
    %539 = vmatpush1.bf16.msra.mxu0 %v384
    %540 = vmatprep.subr.bf16.mxu0 0
    %541 = vmatpush1.bf16.msra.mxu0 %v385
    %542 = vmatprep.subr.bf16.mxu0 0
    %543 = vmatpush1.bf16.msra.mxu0 %v386
    %544 = vmatprep.subr.bf16.mxu0 0
    %545 = vmatpush1.bf16.msra.mxu0 %v387
    %546 = vmatprep.subr.bf16.mxu0 0
    %547 = vmatpush1.bf16.msra.mxu0 %v388
    %548 = vmatprep.subr.bf16.mxu0 0
    %549 = vmatpush1.bf16.msra.mxu0 %v389
    %550 = vmatprep.subr.bf16.mxu0 0
    %551 = vmatpush1.bf16.msra.mxu0 %v390
    %552 = vmatprep.subr.bf16.mxu0 0
    %553 = vmatpush1.bf16.msra.mxu0 %v391
    %554 = vmatprep.subr.bf16.mxu0 0
    %555 = vmatpush1.bf16.msra.mxu0 %v392
    %556 = vmatprep.subr.bf16.mxu0 0
    %557 = vmatpush1.bf16.msra.mxu0 %v393
    %558 = vmatprep.subr.bf16.mxu0 0
    %559 = vmatpush1.bf16.msra.mxu0 %v394
    %560 = vmatprep.subr.bf16.mxu0 0
    %561 = vmatpush1.bf16.msra.mxu0 %v395
    %562 = vmatprep.subr.bf16.mxu0 0
    %563 = vmatpush1.bf16.msra.mxu0 %v396
    %564 = vmatprep.subr.bf16.mxu0 0
    %565 = vmatpush1.bf16.msra.mxu0 %v397
    %566 = vmatprep.mubr.bf16.mxu0 %v47
    %567 = vmatmul.mubr.bf16.gmra.mrb[0].mxu0 %v46
    %v568 = vpop.f32.mrb[0].mxu0
    %v569 = vadd.f32 %v528, %v568
    %v570 = vpop.f32.mrb[0].mxu0
    %v571 = vpop.f32.mrb[0].mxu0
    %v572 = vadd.f32 %v531, %v571
    %v573 = vpop.f32.mrb[0].mxu0
    %574 = vdwg.mxu0
    %575 = vmatprep.subr.bf16.mxu0 0
    %576 = vmatpush1.bf16.msra.mxu0 %v398
    %577 = vmatprep.subr.bf16.mxu0 0
    %578 = vmatpush1.bf16.msra.mxu0 0
    %579 = vmatprep.subr.bf16.mxu0 0
    %580 = vmatpush1.bf16.msra.mxu0 0
    %581 = vmatprep.subr.bf16.mxu0 0
    %582 = vmatpush1.bf16.msra.mxu0 0
    %583 = vmatprep.subr.bf16.mxu0 0
    %584 = vmatpush1.bf16.msra.mxu0 0
    %585 = vmatprep.subr.bf16.mxu0 0
    %586 = vmatpush1.bf16.msra.mxu0 0
    %587 = vmatprep.subr.bf16.mxu0 0
    %588 = vmatpush1.bf16.msra.mxu0 0
    %589 = vmatprep.subr.bf16.mxu0 0
    %590 = vmatpush1.bf16.msra.mxu0 0
    %591 = vmatprep.subr.bf16.mxu0 0
    %592 = vmatpush1.bf16.msra.mxu0 0
    %593 = vmatprep.subr.bf16.mxu0 0
    %594 = vmatpush1.bf16.msra.mxu0 0
    %595 = vmatprep.subr.bf16.mxu0 0
    %596 = vmatpush1.bf16.msra.mxu0 0
    %597 = vmatprep.subr.bf16.mxu0 0
    %598 = vmatpush1.bf16.msra.mxu0 0
    %599 = vmatprep.subr.bf16.mxu0 0
    %600 = vmatpush1.bf16.msra.mxu0 0
    %601 = vmatprep.subr.bf16.mxu0 0
    %602 = vmatpush1.bf16.msra.mxu0 0
    %603 = vmatprep.subr.bf16.mxu0 0
    %604 = vmatpush1.bf16.msra.mxu0 0
    %605 = vmatprep.subr.bf16.mxu0 0
    %606 = vmatpush1.bf16.msra.mxu0 0
    %607 = vmatprep.mubr.bf16.mxu0 0
    %608 = vmatmul.mubr.bf16.gmra.mrb[0].mxu0 %v450
    %v609 = vpop.f32.mrb[0].mxu0
    %v610 = vadd.f32 %v569, %v609
    %v611 = vpop.f32.mrb[0].mxu0
    %v612 = vpop.f32.mrb[0].mxu0
    %v613 = vadd.f32 %v572, %v612
    %v614 = vpop.f32.mrb[0].mxu0
    %615 = vdwg.mxu0
    %v616 = vmax.f32 %v610, 0.0
    %v617 = vmax.f32 %v613, 0.0
    %v618 = vpack.c.bf16 %v617, %v616
    %v619 = vld [vmem:[%s3] sm:$0xf]
    %v620 = vld [vmem:[%s3 + $0x4] sm:$0xf]
    %v621 = vld [vmem:[%s3 + $0x8] sm:$0xf]
    %v622 = vld [vmem:[%s3 + $0xc] sm:$0xf]
    %v623 = vld [vmem:[%s3 + $0x10] sm:$0xf]
    %v624 = vld [vmem:[%s3 + $0x14] sm:$0xf]
    %v625 = vld [vmem:[%s3 + $0x18] sm:$0xf]
    %v626 = vld [vmem:[%s3 + $0x1c] sm:$0xf]
    %v627 = vld [vmem:[%s4] sm:$0x1]
    %v629 = vlaneseq
    %v630 = vshrl.u32 %v629, 7
    %v631 = vsub.s32 0, %v630
    %v632 = vrot.slane %v627, %v631
    %v642 = vunpack.c.l.b16 %v619
    %v643 = vunpack.c.l.b16 %v620
    %v644 = vunpack.c.l.b16 %v621
    %v645 = vunpack.c.l.b16 %v622
    %v646 = vunpack.c.l.b16 %v623
    %v647 = vunpack.c.l.b16 %v624
    %v648 = vunpack.c.l.b16 %v625
    %v649 = vunpack.c.l.b16 %v626
    %v650 = vpack.c.b16 %v643, %v642
    %v651 = vpack.c.b16 %v645, %v644
    %v652 = vpack.c.b16 %v647, %v646
    %v653 = vpack.c.b16 %v649, %v648
    %vm658 = vcmask 523264
    %v660 = vsel %vm658, %v618, 0
    %662 = vmatprep.subr.bf16.mxu0 0
    %663 = vmatpush1.bf16.msra.mxu0 %v650
    %664 = vmatprep.subr.bf16.mxu0 0
    %665 = vmatpush1.bf16.msra.mxu0 %v651
    %666 = vmatprep.subr.bf16.mxu0 0
    %667 = vmatpush1.bf16.msra.mxu0 %v652
    %668 = vmatprep.subr.bf16.mxu0 0
    %669 = vmatpush1.bf16.msra.mxu0 %v653
    %670 = vmatprep.subr.bf16.mxu0 0
    %671 = vmatpush1.bf16.msra.mxu0 0
    %672 = vmatprep.subr.bf16.mxu0 0
    %673 = vmatpush1.bf16.msra.mxu0 0
    %674 = vmatprep.subr.bf16.mxu0 0
    %675 = vmatpush1.bf16.msra.mxu0 0
    %676 = vmatprep.subr.bf16.mxu0 0
    %677 = vmatpush1.bf16.msra.mxu0 0
    %678 = vmatprep.subr.bf16.mxu0 0
    %679 = vmatpush1.bf16.msra.mxu0 0
    %680 = vmatprep.subr.bf16.mxu0 0
    %681 = vmatpush1.bf16.msra.mxu0 0
    %682 = vmatprep.subr.bf16.mxu0 0
    %683 = vmatpush1.bf16.msra.mxu0 0
    %684 = vmatprep.subr.bf16.mxu0 0
    %685 = vmatpush1.bf16.msra.mxu0 0
    %686 = vmatprep.subr.bf16.mxu0 0
    %687 = vmatpush1.bf16.msra.mxu0 0
    %688 = vmatprep.subr.bf16.mxu0 0
    %689 = vmatpush1.bf16.msra.mxu0 0
    %690 = vmatprep.subr.bf16.mxu0 0
    %691 = vmatpush1.bf16.msra.mxu0 0
    %692 = vmatprep.subr.bf16.mxu0 0
    %693 = vmatpush1.bf16.msra.mxu0 0
    %694 = vmatprep.mubr.bf16.mxu0 0
    %695 = vmatmul.mubr.bf16.gmra.mrb[0].mxu0 %v660
    %v696 = vpop.f32.mrb[0].mxu0
    %v697 = vadd.f32 %v632, %v696
    %v698 = vpop.f32.mrb[0].mxu0
    %v699 = vpop.f32.mrb[0].mxu0
    %v700 = vadd.f32 %v632, %v699
    %v701 = vpop.f32.mrb[0].mxu0
    %702 = vdwg.mxu0
    %v703 = vmax.f32 %v697, 0.0
    %v704 = vmax.f32 %v700, 0.0
    %v705 = vpack.c.bf16 %v704, %v703
    %v707 = vsel %vm658, %v705, 0
    %709 = vmatprep.subr.bf16.mxu0 0
    %710 = vmatpush1.bf16.msra.mxu0 %v650
    %711 = vmatprep.subr.bf16.mxu0 0
    %712 = vmatpush1.bf16.msra.mxu0 %v651
    %713 = vmatprep.subr.bf16.mxu0 0
    %714 = vmatpush1.bf16.msra.mxu0 %v652
    %715 = vmatprep.subr.bf16.mxu0 0
    %716 = vmatpush1.bf16.msra.mxu0 %v653
    %717 = vmatprep.subr.bf16.mxu0 0
    %718 = vmatpush1.bf16.msra.mxu0 0
    %719 = vmatprep.subr.bf16.mxu0 0
    %720 = vmatpush1.bf16.msra.mxu0 0
    %721 = vmatprep.subr.bf16.mxu0 0
    %722 = vmatpush1.bf16.msra.mxu0 0
    %723 = vmatprep.subr.bf16.mxu0 0
    %724 = vmatpush1.bf16.msra.mxu0 0
    %725 = vmatprep.subr.bf16.mxu0 0
    %726 = vmatpush1.bf16.msra.mxu0 0
    %727 = vmatprep.subr.bf16.mxu0 0
    %728 = vmatpush1.bf16.msra.mxu0 0
    %729 = vmatprep.subr.bf16.mxu0 0
    %730 = vmatpush1.bf16.msra.mxu0 0
    %731 = vmatprep.subr.bf16.mxu0 0
    %732 = vmatpush1.bf16.msra.mxu0 0
    %733 = vmatprep.subr.bf16.mxu0 0
    %734 = vmatpush1.bf16.msra.mxu0 0
    %735 = vmatprep.subr.bf16.mxu0 0
    %736 = vmatpush1.bf16.msra.mxu0 0
    %737 = vmatprep.subr.bf16.mxu0 0
    %738 = vmatpush1.bf16.msra.mxu0 0
    %739 = vmatprep.subr.bf16.mxu0 0
    %740 = vmatpush1.bf16.msra.mxu0 0
    %741 = vmatprep.mubr.bf16.mxu0 0
    %742 = vmatmul.mubr.bf16.gmra.mrb[0].mxu0 %v707
    %v743 = vpop.f32.mrb[0].mxu0
    %v744 = vadd.f32 %v632, %v743
    %v745 = vpop.f32.mrb[0].mxu0
    %v746 = vpop.f32.mrb[0].mxu0
    %v747 = vadd.f32 %v632, %v746
    %v748 = vpop.f32.mrb[0].mxu0
    %749 = vdwg.mxu0
    %v750 = vmax.f32 %v744, 0.0
    %v751 = vmax.f32 %v747, 0.0
    %v752 = vpack.c.bf16 %v751, %v750
    %v753 = vld [vmem:[%s5] sm:$0xf]
    %v754 = vld [vmem:[%s5 + $0x4] sm:$0xf]
    %v755 = vld [vmem:[%s5 + $0x8] sm:$0xf]
    %v756 = vld [vmem:[%s5 + $0xc] sm:$0xf]
    %v757 = vld [vmem:[%s5 + $0x10] sm:$0xf]
    %v758 = vld [vmem:[%s5 + $0x14] sm:$0xf]
    %v759 = vld [vmem:[%s5 + $0x18] sm:$0xf]
    %v760 = vld [vmem:[%s5 + $0x1c] sm:$0xf]
    %v761 = vld [vmem:[%s6] sm:$0x1]
    %v763 = vlaneseq
    %v764 = vshrl.u32 %v763, 7
    %v765 = vsub.s32 0, %v764
    %v766 = vrot.slane %v761, %v765
    %v776 = vunpack.c.l.b16 %v753
    %v777 = vunpack.c.l.b16 %v754
    %v778 = vunpack.c.l.b16 %v755
    %v779 = vunpack.c.l.b16 %v756
    %v780 = vunpack.c.l.b16 %v757
    %v781 = vunpack.c.l.b16 %v758
    %v782 = vunpack.c.l.b16 %v759
    %v783 = vunpack.c.l.b16 %v760
    %v784 = vpack.c.b16 %v777, %v776
    %v785 = vpack.c.b16 %v779, %v778
    %v786 = vpack.c.b16 %v781, %v780
    %v787 = vpack.c.b16 %v783, %v782
    %v793 = vsel %vm658, %v752, 0
    %795 = vmatprep.subr.bf16.mxu0 0
    %796 = vmatpush1.bf16.msra.mxu0 %v784
    %797 = vmatprep.subr.bf16.mxu0 0
    %798 = vmatpush1.bf16.msra.mxu0 %v785
    %799 = vmatprep.subr.bf16.mxu0 0
    %800 = vmatpush1.bf16.msra.mxu0 %v786
    %801 = vmatprep.subr.bf16.mxu0 0
    %802 = vmatpush1.bf16.msra.mxu0 %v787
    %803 = vmatprep.subr.bf16.mxu0 0
    %804 = vmatpush1.bf16.msra.mxu0 0
    %805 = vmatprep.subr.bf16.mxu0 0
    %806 = vmatpush1.bf16.msra.mxu0 0
    %807 = vmatprep.subr.bf16.mxu0 0
    %808 = vmatpush1.bf16.msra.mxu0 0
    %809 = vmatprep.subr.bf16.mxu0 0
    %810 = vmatpush1.bf16.msra.mxu0 0
    %811 = vmatprep.subr.bf16.mxu0 0
    %812 = vmatpush1.bf16.msra.mxu0 0
    %813 = vmatprep.subr.bf16.mxu0 0
    %814 = vmatpush1.bf16.msra.mxu0 0
    %815 = vmatprep.subr.bf16.mxu0 0
    %816 = vmatpush1.bf16.msra.mxu0 0
    %817 = vmatprep.subr.bf16.mxu0 0
    %818 = vmatpush1.bf16.msra.mxu0 0
    %819 = vmatprep.subr.bf16.mxu0 0
    %820 = vmatpush1.bf16.msra.mxu0 0
    %821 = vmatprep.subr.bf16.mxu0 0
    %822 = vmatpush1.bf16.msra.mxu0 0
    %823 = vmatprep.subr.bf16.mxu0 0
    %824 = vmatpush1.bf16.msra.mxu0 0
    %825 = vmatprep.subr.bf16.mxu0 0
    %826 = vmatpush1.bf16.msra.mxu0 0
    %827 = vmatprep.mubr.bf16.mxu0 0
    %828 = vmatmul.mubr.bf16.gmra.mrb[0].mxu0 %v793
    %v829 = vpop.f32.mrb[0].mxu0
    %v830 = vadd.f32 %v766, %v829
    %v831 = vpop.f32.mrb[0].mxu0
    %v832 = vpop.f32.mrb[0].mxu0
    %v833 = vadd.f32 %v766, %v832
    %v834 = vpop.f32.mrb[0].mxu0
    %835 = vdwg.mxu0
    %v836 = vlaneseq
    %v837 = vand.u32 %v836, 127
    %vm838 = vcmp.lt.s32.totalorder %v837, 10
    %v839 = vsel %vm838, %v830, -1e+30
    %v840 = vsel %vm838, %v833, -1e+30
    %841 = vmax.xlane.f32.xlu0 %v839
    %v842 = vpop.xlane.xlu0 %841
    %843 = vmax.xlane.f32.xlu0 %v840
    %v844 = vpop.xlane.xlu0 %843
    %v845 = vsub.f32 %v839, %v842
    %v846 = vsub.f32 %v840, %v844
    %v847 = vmul.f32 %v845, 1.442695
    %v848 = vpow.pop %v847
    %v849 = vmul.f32 %v846, 1.442695
    %v850 = vpow.pop %v849
    %v851 = vsel %vm838, %v848, 0.0
    %v852 = vsel %vm838, %v850, 0.0
    %853 = vadd.xlane.f32.xlu0 %v851
    %v854 = vpop.xlane.xlu0 %853
    %855 = vadd.xlane.f32.xlu0 %v852
    %v856 = vpop.xlane.xlu0 %855
    %v857 = vlog2.pop %v854
    %v858 = vmul.f32 %v857, 0.6931472
    %v859 = vlog2.pop %v856
    %v860 = vmul.f32 %v859, 0.6931472
    %v861 = vsub.f32 %v845, %v858
    %v862 = vsub.f32 %v846, %v860
    %v863 = vpack.c.bf16 %v862, %v861
    %v865 = vunpack.c.l.b16 %v863
    %v866 = vunpack.c.h.b16 %v863
    %v867 = vpack.c.b16 %v865, %v865
    %v868 = vpack.c.b16 %v866, %v866
    %871 = vst [vmem:[#allocation2] sm:$0xf] %v867
    %872 = vst [vmem:[#allocation2 + $0x4] sm:$0xf] %v868
    // Predicated region
    $region30: #{tpu_custom_call.1} parent=1 // pred_check
      _
    $region31: #{tpu_custom_call.1} parent=1 // pred_check_branch
      %874 = sbr.rel (0) target = $region33
    $region32: #{tpu_custom_call.1} parent=1 // pred_region
      %s876 = ssub.s32 128, 128
      %877 = vsyncadd [#allocation3], %s876
      %s878 = sshll.u32 [#allocation2], 4
      %s879 = int_to_ptr.vmem [resolvable:$true] %s878
      %884 = dma.vmem_to_hbm [thread:$0]  %s879, 128, %s7, [#allocation3], 64, 64, 4
    $region33: #{tpu_custom_call.1} parent=1 // pred_fallthru
      _
    // Predicated region
    $region34: #{tpu_custom_call.1} parent=1 // pred_check
      _
    $region35: #{tpu_custom_call.1} parent=1 // pred_check_branch
      %886 = sbr.rel (0) target = $region37
    $region36: #{tpu_custom_call.1} parent=1 // pred_region
      %887 = dma.done [#allocation3], 128
    $region37: #{tpu_custom_call.1} parent=1 // pred_fallthru
      _
    %888 = vsyncpa [#allocation3], 1

</llo_original>
